<compile_context>
chip_gen: v7x
topology: tpu7x:2x2x1
jax: 0.10.0
libtpu: 0.0.40
codegen_flags: <defaults>
</compile_context>

<pallas_src>
import jax
import jax.numpy as jnp
from jax.experimental import pallas as pl
from jax.experimental.pallas import tpu as pltpu

SCALE = 20.0
EPS = 1e-12


def _make_bce_kernel(batch_size, block_b):
    """Build the kernel closed over the static batch size / tile size."""

    def kernel(q_ref, pos_ref, neg_ref, sign_ref, out_ref):
        # Upcast one operand at a time so at most ~2 (TB, D) f32 temporaries
        # are live simultaneously (bounds the VMEM working set).
        q = q_ref[...].astype(jnp.float32)                      # (TB, D)
        sumsq_q = jnp.sum(q * q, axis=-1, keepdims=True)        # (TB, 1)

        p = pos_ref[...].astype(jnp.float32)
        sumsq_p = jnp.sum(p * p, axis=-1, keepdims=True)
        dot_qp = jnp.sum(q * p, axis=-1, keepdims=True)

        n = neg_ref[...].astype(jnp.float32)
        sumsq_n = jnp.sum(n * n, axis=-1, keepdims=True)
        dot_qn = jnp.sum(q * n, axis=-1, keepdims=True)

        # 1 / max(||x||, eps) == rsqrt(max(sum_sq, eps^2))  (torch F.normalize).
        inv_q = jax.lax.rsqrt(jnp.maximum(sumsq_q, EPS * EPS))
        inv_p = jax.lax.rsqrt(jnp.maximum(sumsq_p, EPS * EPS))
        inv_n = jax.lax.rsqrt(jnp.maximum(sumsq_n, EPS * EPS))

        s_pos = dot_qp * inv_q * inv_p * SCALE                  # (TB, 1)
        s_neg = dot_qn * inv_q * inv_n * SCALE                  # (TB, 1)

        # 2-class cross entropy: lse(scores) - scores[label] == softplus(diff)
        # with diff = s_other - s_selected; sign_ref holds +1 (label 0) / -1.
        diff = sign_ref[...] * (s_neg - s_pos)
        # Numerically stable softplus: max(x, 0) + log(1 + exp(-|x|)).
        per_example = jnp.maximum(diff, 0.0) + jnp.log(1.0 + jnp.exp(-jnp.abs(diff)))

        # Zero padded tail rows so garbage/NaN never reaches the output.
        row = (jax.lax.broadcasted_iota(jnp.int32, (block_b, 1), 0)
               + pl.program_id(0) * block_b)
        out_ref[...] = jnp.where(row < batch_size, per_example, 0.0)

    return kernel


def _vmem_budget_bytes():
    """Per-step VMEM budget with headroom, per-generation aware."""
    phys = 64 * 2**20  # conservative default: v7x has 64 MiB per TensorCore
    try:
        info = pltpu.get_tpu_info()
        phys = int(getattr(info, "vmem_capacity_bytes", phys)) or phys
    except Exception:
        pass
    # ~42 MiB on v7x (64 MiB physical), ~83 MiB on v5e/v6e (128 MiB physical).
    return min(int(phys * 0.65), 96 * 2**20)


def _pick_block_b(B, D, in_itemsize, vmem_budget):
    """Largest batch tile that fits the VMEM budget, with >= 2 grid steps."""
    # Per-row per-step VMEM estimate:
    #   3 input streams x 2 pipeline buffers x D x itemsize
    #   + ~3 f32 (TB, D) compute temporaries
    #   + 2 streams (sign, output) x 2 buffers x lane-padded 128 x f32
    per_row = 6 * D * in_itemsize + 12 * D + 4 * 128 * 4
    tb = int((vmem_budget * 9 // 10) // per_row)
    tb = (tb // 8) * 8
    tb = max(8, min(tb, 4096))           # bound per-step DMA latency
    if B >= 16:
        # >= 2 grid steps so both v7x TensorCores (parallel axis) get work.
        tb = min(tb, max(8, (B // 2) // 8 * 8))
    tb = min(tb, max(8, -(-B // 8) * 8))  # never bigger than (rounded-up) B
    return tb


def bce_loss(embeddings_q, embeddings_pos, embeddings_neg, labels, *, block_b=None):
    """Pallas implementation of BCELoss.forward given precomputed embeddings.

    embeddings_*: (B, D) arrays.  Recommended caller contract: bf16 (the
                  kernel upcasts to f32 internally; bf16 halves HBM traffic
                  for this bandwidth-bound kernel).
    labels:       (B,) int class indices in {0, 1}
    returns:      scalar float32 loss (mean cross entropy)
    """
    B, D = embeddings_q.shape
    in_itemsize = jnp.dtype(embeddings_q.dtype).itemsize

    # +1 for label 0 (positive selected), -1 for label 1 (negative selected).
    sign = (1.0 - 2.0 * labels.reshape(B, 1).astype(jnp.float32))

    vmem_budget = _vmem_budget_bytes()
    if block_b is None:
        TB = _pick_block_b(B, D, in_itemsize, vmem_budget)
    else:
        TB = max(8, min((block_b // 8) * 8, max(8, -(-B // 8) * 8)))
    grid = (pl.cdiv(B, TB),)

    cost = pl.CostEstimate(
        flops=10 * B * D,              # 5 fused mul+add reduction passes
        transcendentals=5 * B,         # 3 rsqrt + exp + log per row
        bytes_accessed=3 * B * D * in_itemsize + 8 * B,
    )

    per_example = pl.pallas_call(
        _make_bce_kernel(B, TB),
        out_shape=jax.ShapeDtypeStruct((B, 1), jnp.float32),
        grid=grid,
        in_specs=[
            pl.BlockSpec((TB, D), lambda i: (i, 0)),
            pl.BlockSpec((TB, D), lambda i: (i, 0)),
            pl.BlockSpec((TB, D), lambda i: (i, 0)),
            pl.BlockSpec((TB, 1), lambda i: (i, 0)),
        ],
        out_specs=pl.BlockSpec((TB, 1), lambda i: (i, 0)),
        compiler_params=pltpu.CompilerParams(
            dimension_semantics=("parallel",),
            vmem_limit_bytes=vmem_budget,
        ),
        cost_estimate=cost,
    )(embeddings_q, embeddings_pos, embeddings_neg, sign)

    # Mean reduction over the true batch size (tiny O(B) reduce outside).
    return jnp.mean(per_example)


def _reference(q, p, n, labels):
    q = q.astype(jnp.float32)
    p = p.astype(jnp.float32)
    n = n.astype(jnp.float32)

    def norm(x):
        nrm = jnp.sqrt(jnp.sum(x * x, axis=-1, keepdims=True))
        return x / jnp.maximum(nrm, EPS)

    qn, pn, nn_ = norm(q), norm(p), norm(n)
    scores = jnp.stack(
        [jnp.sum(qn * pn, -1), jnp.sum(qn * nn_, -1)], axis=1) * SCALE
    logz = jax.scipy.special.logsumexp(scores, axis=1)
    sel = jnp.take_along_axis(scores, labels[:, None], axis=1)[:, 0]
    return jnp.mean(logz - sel)


if __name__ == "__main__":
    key = jax.random.PRNGKey(0)
    B, D = 40, 128      # B deliberately not a multiple of the tile -> tests masking
    kq, kp, kn, kl = jax.random.split(key, 4)
    # Encoder is assumed to emit bf16 sentence embeddings (caller contract for
    # the bandwidth-bound kernel); arithmetic stays in f32 inside the kernel.
    embeddings_q = jax.random.normal(kq, (B, D), jnp.float32).astype(jnp.bfloat16)
    embeddings_pos = jax.random.normal(kp, (B, D), jnp.float32).astype(jnp.bfloat16)
    embeddings_neg = jax.random.normal(kn, (B, D), jnp.float32).astype(jnp.bfloat16)

    # Module passes `labels` to CrossEntropyLoss (the in-body `lebels` is dead
    # code).  Check both the intended all-zero labels and a mixed label set.
    labels_zero = jnp.zeros((B,), jnp.int32)
    labels_mixed = jax.random.bernoulli(kl, 0.5, (B,)).astype(jnp.int32)

    for labels in (labels_zero, labels_mixed):
        loss = bce_loss(embeddings_q, embeddings_pos, embeddings_neg, labels)
        jax.block_until_ready(loss)
        ref = _reference(embeddings_q, embeddings_pos, embeddings_neg, labels)
        assert jnp.allclose(loss, ref, atol=1e-4, rtol=1e-4), (loss, ref)

    # TODO(synk): the upstream `self.model(sentence_feature)` encoder is an
    # arbitrary external network and is not reimplemented; embeddings are
    # taken as kernel inputs.
    print("KERNEL_OK")
</pallas_src>

<mosaic_0001>
module attributes {stable_mosaic.version = 11 : i64} {
  func.func @kernel(%arg0: i32, %arg1: memref<16x128xbf16, #tpu.memory_space<vmem>>, %arg2: memref<16x128xbf16, #tpu.memory_space<vmem>>, %arg3: memref<16x128xbf16, #tpu.memory_space<vmem>>, %arg4: memref<16x1xf32, #tpu.memory_space<vmem>>, %arg5: memref<16x1xf32, #tpu.memory_space<vmem>>) attributes {dimension_semantics = [#tpu.dimension_semantics<parallel>], iteration_bounds = array<i64: 3>, scalar_prefetch = 0 : i64, scratch_operands = 0 : i64, tpu.core_type = #tpu.core_type<tc>, window_params = [{transform_indices = @transform_0, window_bounds = array<i64: 16, 128>}, {transform_indices = @transform_1, window_bounds = array<i64: 16, 128>}, {transform_indices = @transform_2, window_bounds = array<i64: 16, 128>}, {transform_indices = @transform_3, window_bounds = array<i64: 16, 1>}, {transform_indices = @transform_4, window_bounds = array<i64: 16, 1>}]} {
    %c0 = arith.constant 0 : index
    %c0_0 = arith.constant 0 : index
    %0 = vector.load %arg1[%c0, %c0_0] : memref<16x128xbf16, #tpu.memory_space<vmem>>, vector<16x128xbf16>
    %1 = arith.extf %0 : vector<16x128xbf16> to vector<16x128xf32>
    %2 = arith.mulf %1, %1 : vector<16x128xf32>
    %cst = arith.constant dense<0.000000e+00> : vector<16xf32>
    %3 = vector.multi_reduction <add>, %2, %cst [1] : vector<16x128xf32> to vector<16xf32>
    %4 = vector.shape_cast %3 : vector<16xf32> to vector<16x1xf32>
    %c0_1 = arith.constant 0 : index
    %c0_2 = arith.constant 0 : index
    %5 = vector.load %arg2[%c0_1, %c0_2] : memref<16x128xbf16, #tpu.memory_space<vmem>>, vector<16x128xbf16>
    %6 = arith.extf %5 : vector<16x128xbf16> to vector<16x128xf32>
    %7 = arith.mulf %6, %6 : vector<16x128xf32>
    %cst_3 = arith.constant dense<0.000000e+00> : vector<16xf32>
    %8 = vector.multi_reduction <add>, %7, %cst_3 [1] : vector<16x128xf32> to vector<16xf32>
    %9 = vector.shape_cast %8 : vector<16xf32> to vector<16x1xf32>
    %10 = arith.mulf %1, %6 : vector<16x128xf32>
    %cst_4 = arith.constant dense<0.000000e+00> : vector<16xf32>
    %11 = vector.multi_reduction <add>, %10, %cst_4 [1] : vector<16x128xf32> to vector<16xf32>
    %12 = vector.shape_cast %11 : vector<16xf32> to vector<16x1xf32>
    %c0_5 = arith.constant 0 : index
    %c0_6 = arith.constant 0 : index
    %13 = vector.load %arg3[%c0_5, %c0_6] : memref<16x128xbf16, #tpu.memory_space<vmem>>, vector<16x128xbf16>
    %14 = arith.extf %13 : vector<16x128xbf16> to vector<16x128xf32>
    %15 = arith.mulf %14, %14 : vector<16x128xf32>
    %cst_7 = arith.constant dense<0.000000e+00> : vector<16xf32>
    %16 = vector.multi_reduction <add>, %15, %cst_7 [1] : vector<16x128xf32> to vector<16xf32>
    %17 = vector.shape_cast %16 : vector<16xf32> to vector<16x1xf32>
    %18 = arith.mulf %1, %14 : vector<16x128xf32>
    %cst_8 = arith.constant dense<0.000000e+00> : vector<16xf32>
    %19 = vector.multi_reduction <add>, %18, %cst_8 [1] : vector<16x128xf32> to vector<16xf32>
    %20 = vector.shape_cast %19 : vector<16xf32> to vector<16x1xf32>
    %cst_9 = arith.constant 1.000000e-24 : f32
    %21 = vector.broadcast %cst_9 : f32 to vector<16x1xf32>
    %22 = arith.maximumf %4, %21 : vector<16x1xf32>
    %23 = math.rsqrt %22 : vector<16x1xf32>
    %cst_10 = arith.constant 1.000000e-24 : f32
    %24 = vector.broadcast %cst_10 : f32 to vector<16x1xf32>
    %25 = arith.maximumf %9, %24 : vector<16x1xf32>
    %26 = math.rsqrt %25 : vector<16x1xf32>
    %cst_11 = arith.constant 1.000000e-24 : f32
    %27 = vector.broadcast %cst_11 : f32 to vector<16x1xf32>
    %28 = arith.maximumf %17, %27 : vector<16x1xf32>
    %29 = math.rsqrt %28 : vector<16x1xf32>
    %30 = arith.mulf %12, %23 : vector<16x1xf32>
    %31 = arith.mulf %30, %26 : vector<16x1xf32>
    %cst_12 = arith.constant 2.000000e+01 : f32
    %32 = vector.broadcast %cst_12 : f32 to vector<16x1xf32>
    %33 = arith.mulf %31, %32 : vector<16x1xf32>
    %34 = arith.mulf %20, %23 : vector<16x1xf32>
    %35 = arith.mulf %34, %29 : vector<16x1xf32>
    %cst_13 = arith.constant 2.000000e+01 : f32
    %36 = vector.broadcast %cst_13 : f32 to vector<16x1xf32>
    %37 = arith.mulf %35, %36 : vector<16x1xf32>
    %c0_14 = arith.constant 0 : index
    %c0_15 = arith.constant 0 : index
    %38 = vector.load %arg4[%c0_14, %c0_15] : memref<16x1xf32, #tpu.memory_space<vmem>>, vector<16x1xf32>
    %39 = arith.subf %37, %33 : vector<16x1xf32>
    %40 = arith.mulf %38, %39 : vector<16x1xf32>
    %cst_16 = arith.constant 0.000000e+00 : f32
    %41 = vector.broadcast %cst_16 : f32 to vector<16x1xf32>
    %42 = arith.maximumf %40, %41 : vector<16x1xf32>
    %43 = math.absf %40 : vector<16x1xf32>
    %cst_17 = arith.constant 0.000000e+00 : f32
    %44 = vector.broadcast %cst_17 : f32 to vector<16x1xf32>
    %45 = arith.subf %44, %43 : vector<16x1xf32>
    %46 = math.exp %45 : vector<16x1xf32>
    %cst_18 = arith.constant 1.000000e+00 : f32
    %47 = vector.broadcast %cst_18 : f32 to vector<16x1xf32>
    %48 = arith.addf %47, %46 : vector<16x1xf32>
    %49 = math.log %48 : vector<16x1xf32>
    %50 = arith.addf %42, %49 : vector<16x1xf32>
    %51 = tpu.iota {dimensions = array<i32: 0>} : vector<16x1xi32>
    %c16_i32 = arith.constant 16 : i32
    %52 = arith.muli %arg0, %c16_i32 : i32
    %53 = vector.broadcast %52 : i32 to vector<16x1xi32>
    %54 = arith.addi %51, %53 : vector<16x1xi32>
    %c40_i32 = arith.constant 40 : i32
    %55 = vector.broadcast %c40_i32 : i32 to vector<16x1xi32>
    %56 = arith.cmpi slt, %54, %55 : vector<16x1xi32>
    %cst_19 = arith.constant 0.000000e+00 : f32
    %57 = vector.broadcast %cst_19 : f32 to vector<16x1xf32>
    %58 = arith.select %56, %50, %57 : vector<16x1xi1>, vector<16x1xf32>
    %c0_20 = arith.constant 0 : index
    %c0_21 = arith.constant 0 : index
    %59 = vector.load %arg5[%c0_20, %c0_21] : memref<16x1xf32, #tpu.memory_space<vmem>>, vector<16x1xf32>
    tpu.vector_store %arg5[%c0_20, %c0_21], %58 {strides = array<i32>} : memref<16x1xf32, #tpu.memory_space<vmem>>, vector<16x1xf32>,
    return
  }
  func.func @transform_0(%arg0: i32) -> (i32, i32) {
    %c0_i32 = arith.constant 0 : i32
    %c0_i32_0 = arith.constant 0 : i32
    return %arg0, %c0_i32 : i32, i32
  }
  func.func @transform_1(%arg0: i32) -> (i32, i32) {
    %c0_i32 = arith.constant 0 : i32
    %c0_i32_0 = arith.constant 0 : i32
    return %arg0, %c0_i32 : i32, i32
  }
  func.func @transform_2(%arg0: i32) -> (i32, i32) {
    %c0_i32 = arith.constant 0 : i32
    %c0_i32_0 = arith.constant 0 : i32
    return %arg0, %c0_i32 : i32, i32
  }
  func.func @transform_3(%arg0: i32) -> (i32, i32) {
    %c0_i32 = arith.constant 0 : i32
    %c0_i32_0 = arith.constant 0 : i32
    return %arg0, %c0_i32 : i32, i32
  }
  func.func @transform_4(%arg0: i32) -> (i32, i32) {
    %c0_i32 = arith.constant 0 : i32
    %c0_i32_0 = arith.constant 0 : i32
    return %arg0, %c0_i32 : i32, i32
  }
}

</mosaic_0001>

<llo_original>
// kernel: tpu_custom_call.1
$region0: #{tpu_custom_call.1}
  #allocation0 [shape = 'u32[]', space=smem, size = 0x4, offset = 0x4, fixed_abs, tag = 'smem constant byte address 0x4 - core index']
  #allocation1 [shape = 'u32[144,128]{1,0:T(1,128)}', space=vmem, size = 0x12000, scoped, tag = 'internal scratch']
  %s0 = inlined_call_operand.vmem [shape: bf16[40,128], index: 0, kind: input, shape index: {}]
  %s1 = inlined_call_operand.vmem [shape: bf16[40,128], index: 1, kind: input, shape index: {}]
  %s2 = inlined_call_operand.hbm [shape: bf16[40,128], index: 2, kind: input, shape index: {}]
  %s3 = inlined_call_operand.vmem [shape: f32[40,1], index: 3, kind: input, shape index: {}]
  %s4 = inlined_call_operand.vmem [shape: f32[40,1], index: 4, kind: output, shape index: {}]
  %s5 = sld [smem:[#allocation0]]
  $region101: #{tpu_custom_call.1} parent=0
    _
  %s7 = ssub.s32 1, %s5
  %s8 = scalar_select 0, %s7, %s5
  $region1: #{tpu_custom_call.1} parent=0
    #allocation2 [shape = 'u8[8192]{0}', space=vmem, size = 0x2000, scoped, tag = 'input window, operand 2']
    #allocation3 [shape = 's32[2]{0}', space=sflag, size = 0x8, scoped, tag = 'scoped memory for tpu_custom_call.1']
    #allocation4 [shape = 'u8[16384]{0}', space=vmem, size = 0x4000, scoped, tag = 'output window, operand 0']
    %9 = vsyncpa [#allocation3], 0
    %s10 = scalar_lea.sflag [#allocation3], 1
    %11 = vsyncpa %s10, 0
    loop: start=0, step=1, limit=5
    $region2: #{tpu_custom_call.1} parent=1 // loop_pre_header
      _
    $region3: #{tpu_custom_call.1} parent=1 // loop_header
      %s13 = sphi 0, %s17
      %p14 = scmp.ge.s32.totalorder %s13, 5
      %s23 = sphi 0, %s25
      %s26 = sphi 0, %s23
      %s27 = sphi 0, %s26
      %s43 = sphi 0, %s27
      %s49 = sphi 0, %s51
      %s52 = sphi 0, %s49
      %s53 = sphi 0, %s52
      %s69 = sphi 0, %s53
      %s75 = sphi 0, %s77
      %s78 = sphi 0, %s75
      %s79 = sphi 0, %s78
      %s95 = sphi 0, %s79
      %s101 = sphi 0, %s103
      %s104 = sphi 0, %s101
      %s105 = sphi 0, %s104
      %s121 = sphi 0, %s105
      %s127 = sphi 0, %s129
      %s130 = sphi 0, %s127
      %s131 = sphi 0, %s130
      %s147 = sphi 0, %s131
    $region4: #{tpu_custom_call.1} parent=1 // loop_header_branch
      %16 = sbr.rel (%p14) target = $region8
    $region5: #{tpu_custom_call.1} parent=1 // loop_body
      %s18 = ssub.s32 %s13, 1
      %s19 = ssub.s32 %s13, 2
      %s20 = sadd.s32 %s13, 1
      %s21 = ssub.s32 %s13, %s20
      %p22 = scmp.eq.s32.totalorder %s21, 0
      %s24 = sadd.s32 %s23, 1
      %s25 = scalar_select %p22, %s23, %s24
      %p28 = pneg %p22
      %p29 = scmp.eq.s32.totalorder %s13, 2
      %p30 = por %p28, %p29
      %p31 = scmp.ne.s32.totalorder %s23, %s26
      %p32 = scmp.eq.s32.totalorder %s13, 0
      %p33 = por %p31, %p32
      %p34 = scmp.ne.s32.totalorder %s23, %s26
      %p35 = scmp.eq.s32.totalorder %s18, 2
      %p36 = por %p34, %p35
      %p37 = scmp.ne.s32.totalorder %s26, %s27
      %p38 = scmp.eq.s32.totalorder %s18, 0
      %p39 = por %p37, %p38
      %p40 = scmp.ne.s32.totalorder %s26, %s27
      %p41 = scmp.eq.s32.totalorder %s19, 2
      %p42 = por %p40, %p41
      %p44 = scmp.ne.s32.totalorder %s27, %s43
      %p45 = scmp.eq.s32.totalorder %s19, 0
      %p46 = por %p44, %p45
      %s47 = ssub.s32 %s13, %s20
      %p48 = scmp.eq.s32.totalorder %s47, 0
      %s50 = sadd.s32 %s49, 1
      %s51 = scalar_select %p48, %s49, %s50
      %p54 = pneg %p48
      %p55 = scmp.eq.s32.totalorder %s13, 2
      %p56 = por %p54, %p55
      %p57 = scmp.ne.s32.totalorder %s49, %s52
      %p58 = scmp.eq.s32.totalorder %s13, 0
      %p59 = por %p57, %p58
      %p60 = scmp.ne.s32.totalorder %s49, %s52
      %p61 = scmp.eq.s32.totalorder %s18, 2
      %p62 = por %p60, %p61
      %p63 = scmp.ne.s32.totalorder %s52, %s53
      %p64 = scmp.eq.s32.totalorder %s18, 0
      %p65 = por %p63, %p64
      %p66 = scmp.ne.s32.totalorder %s52, %s53
      %p67 = scmp.eq.s32.totalorder %s19, 2
      %p68 = por %p66, %p67
      %p70 = scmp.ne.s32.totalorder %s53, %s69
      %p71 = scmp.eq.s32.totalorder %s19, 0
      %p72 = por %p70, %p71
      %s73 = ssub.s32 %s13, %s20
      %p74 = scmp.eq.s32.totalorder %s73, 0
      %s76 = sadd.s32 %s75, 1
      %s77 = scalar_select %p74, %s75, %s76
      %p80 = pneg %p74
      %p81 = scmp.eq.s32.totalorder %s13, 2
      %p82 = por %p80, %p81
      %p83 = scmp.ne.s32.totalorder %s75, %s78
      %p84 = scmp.eq.s32.totalorder %s13, 0
      %p85 = por %p83, %p84
      %p86 = scmp.ne.s32.totalorder %s75, %s78
      %p87 = scmp.eq.s32.totalorder %s18, 2
      %p88 = por %p86, %p87
      %p89 = scmp.ne.s32.totalorder %s78, %s79
      %p90 = scmp.eq.s32.totalorder %s18, 0
      %p91 = por %p89, %p90
      %p92 = scmp.ne.s32.totalorder %s78, %s79
      %p93 = scmp.eq.s32.totalorder %s19, 2
      %p94 = por %p92, %p93
      %p96 = scmp.ne.s32.totalorder %s79, %s95
      %p97 = scmp.eq.s32.totalorder %s19, 0
      %p98 = por %p96, %p97
      %s99 = ssub.s32 %s13, %s20
      %p100 = scmp.eq.s32.totalorder %s99, 0
      %s102 = sadd.s32 %s101, 1
      %s103 = scalar_select %p100, %s101, %s102
      %p106 = pneg %p100
      %p107 = scmp.eq.s32.totalorder %s13, 2
      %p108 = por %p106, %p107
      %p109 = scmp.ne.s32.totalorder %s101, %s104
      %p110 = scmp.eq.s32.totalorder %s13, 0
      %p111 = por %p109, %p110
      %p112 = scmp.ne.s32.totalorder %s101, %s104
      %p113 = scmp.eq.s32.totalorder %s18, 2
      %p114 = por %p112, %p113
      %p115 = scmp.ne.s32.totalorder %s104, %s105
      %p116 = scmp.eq.s32.totalorder %s18, 0
      %p117 = por %p115, %p116
      %p118 = scmp.ne.s32.totalorder %s104, %s105
      %p119 = scmp.eq.s32.totalorder %s19, 2
      %p120 = por %p118, %p119
      %p122 = scmp.ne.s32.totalorder %s105, %s121
      %p123 = scmp.eq.s32.totalorder %s19, 0
      %p124 = por %p122, %p123
      %s125 = ssub.s32 %s13, %s20
      %p126 = scmp.eq.s32.totalorder %s125, 0
      %s128 = sadd.s32 %s127, 1
      %s129 = scalar_select %p126, %s127, %s128
      %p132 = pneg %p126
      %p133 = scmp.eq.s32.totalorder %s13, 2
      %p134 = por %p132, %p133
      %p135 = scmp.ne.s32.totalorder %s127, %s130
      %p136 = scmp.eq.s32.totalorder %s13, 0
      %p137 = por %p135, %p136
      %p138 = scmp.ne.s32.totalorder %s127, %s130
      %p139 = scmp.eq.s32.totalorder %s18, 2
      %p140 = por %p138, %p139
      %p141 = scmp.ne.s32.totalorder %s130, %s131
      %p142 = scmp.eq.s32.totalorder %s18, 0
      %p143 = por %p141, %p142
      %p144 = scmp.ne.s32.totalorder %s130, %s131
      %p145 = scmp.eq.s32.totalorder %s19, 2
      %p146 = por %p144, %p145
      %p148 = scmp.ne.s32.totalorder %s131, %s147
      %p149 = scmp.eq.s32.totalorder %s19, 0
      %p150 = por %p148, %p149
      %p151 = scmp.le.s32.totalorder 1, %s13
      %p152 = scmp.lt.s32.totalorder %s13, 4
      %p153 = pnand %p151, %p152
      %p154 = pneg %p153
      // Predicated region
      $region9: #{tpu_custom_call.1} parent=5 // pred_check
        _
      $region10: #{tpu_custom_call.1} parent=5 // pred_check_branch
        %156 = sbr.rel (%p153) target = $region12
      $region11: #{tpu_custom_call.1} parent=5 // pred_region
        %s157 = ssub.s32 %s13, 1
      $region12: #{tpu_custom_call.1} parent=5 // pred_fallthru
        _
      %p158 = scmp.lt.s32.totalorder %s13, 3
      // Predicated region
      $region13: #{tpu_custom_call.1} parent=5 // pred_check
        %p159 = pneg %p158
      $region14: #{tpu_custom_call.1} parent=5 // pred_check_branch
        %161 = sbr.rel (%p159) target = $region16
      $region15: #{tpu_custom_call.1} parent=5 // pred_region
        // Predicated region
        $region17: #{tpu_custom_call.1} parent=15 // pred_check
          %p162 = pneg %p33
        $region18: #{tpu_custom_call.1} parent=15 // pred_check_branch
          %164 = sbr.rel (%p162) target = $region20
        $region19: #{tpu_custom_call.1} parent=15 // pred_region
          %s165 = smul.u32 2, %s13
          %s166 = ssub.s32 5, %s165
          %p167 = scmp.lt.s32.totalorder %s166, 2
          %s168 = scalar_select %p167, %s166, 2
          %s169 = smul.u32 64, %s168
          %p170 = scmp.lt.s32.totalorder %s165, 4
          %s171 = scalar_select %p170, %s165, 4
          %s172 = smul.addr %s171, 4
          %s173 = scalar_lea.vmem %s0, %s172
          %s174 = smul.u32 2, %s13
          %s175 = ssub.s32 5, %s174
          %p176 = scmp.lt.s32.totalorder %s175, 2
          %s177 = scalar_select %p176, %s175, 2
          %s178 = smul.u32 64, %s177
        $region20: #{tpu_custom_call.1} parent=15 // pred_fallthru
          _
        // Predicated region
        $region21: #{tpu_custom_call.1} parent=15 // pred_check
          %p179 = pneg %p59
        $region22: #{tpu_custom_call.1} parent=15 // pred_check_branch
          %181 = sbr.rel (%p179) target = $region24
        $region23: #{tpu_custom_call.1} parent=15 // pred_region
          %s182 = smul.u32 2, %s13
          %s183 = ssub.s32 5, %s182
          %p184 = scmp.lt.s32.totalorder %s183, 2
          %s185 = scalar_select %p184, %s183, 2
          %s186 = smul.u32 64, %s185
          %p187 = scmp.lt.s32.totalorder %s182, 4
          %s188 = scalar_select %p187, %s182, 4
          %s189 = smul.addr %s188, 4
          %s190 = scalar_lea.vmem %s1, %s189
          %s191 = smul.u32 2, %s13
          %s192 = ssub.s32 5, %s191
          %p193 = scmp.lt.s32.totalorder %s192, 2
          %s194 = scalar_select %p193, %s192, 2
          %s195 = smul.u32 64, %s194
        $region24: #{tpu_custom_call.1} parent=15 // pred_fallthru
          _
        // Predicated region
        $region25: #{tpu_custom_call.1} parent=15 // pred_check
          %p196 = pneg %p85
        $region26: #{tpu_custom_call.1} parent=15 // pred_check_branch
          %198 = sbr.rel (%p196) target = $region28
        $region27: #{tpu_custom_call.1} parent=15 // pred_region
          %s199 = sand.u32 %s75, 1
          %s200 = scalar_lea.sflag [#allocation3], %s199
          %s201 = sand.u32 %s75, 1
          %s202 = smul.addr %s201, 8
          %s203 = scalar_lea.vmem [#allocation2], %s202
          %s204 = smul.u32 2, %s13
          %s205 = ssub.s32 5, %s204
          %p206 = scmp.lt.s32.totalorder %s205, 2
          %s207 = scalar_select %p206, %s205, 2
          %s208 = smul.u32 64, %s207
          %s210 = ssub.s32 128, %s208
          %211 = vsyncadd %s200, %s210
          %p212 = scmp.ne.s32.totalorder 0, %s208
          %s213 = smul.addr %s204, 64
          %s214 = scalar_lea.hbm %s2, %s213
          %s215 = smul.u32 4, %s207
          %s216 = sshll.u32 %s203, 4
          %s217 = int_to_ptr.vmem [resolvable:$true] %s216
          %s218 = sshll.u32 %s215, 4
          %222 = dma.hbm_to_vmem [thread:$0]  (%p212), %s214, %s218, %s217, %s200, 64, 64, 4
        $region28: #{tpu_custom_call.1} parent=15 // pred_fallthru
          _
        // Predicated region
        $region29: #{tpu_custom_call.1} parent=15 // pred_check
          %p223 = pneg %p111
        $region30: #{tpu_custom_call.1} parent=15 // pred_check_branch
          %225 = sbr.rel (%p223) target = $region32
        $region31: #{tpu_custom_call.1} parent=15 // pred_region
          %s226 = smul.u32 2, %s13
          %s227 = ssub.s32 5, %s226
          %p228 = scmp.lt.s32.totalorder %s227, 2
          %s229 = scalar_select %p228, %s227, 2
          %s230 = smul.u32 128, %s229
          %p231 = scmp.lt.s32.totalorder %s226, 4
          %s232 = scalar_select %p231, %s226, 4
          %s233 = smul.addr %s232, 8
          %s234 = scalar_lea.vmem %s3, %s233
          %s235 = smul.u32 2, %s13
          %s236 = ssub.s32 5, %s235
          %p237 = scmp.lt.s32.totalorder %s236, 2
          %s238 = scalar_select %p237, %s236, 2
          %s239 = smul.u32 128, %s238
        $region32: #{tpu_custom_call.1} parent=15 // pred_fallthru
          _
      $region16: #{tpu_custom_call.1} parent=5 // pred_fallthru
        _
      %p240 = scmp.le.s32.totalorder 1, %s13
      %p241 = scmp.lt.s32.totalorder %s13, 4
      %p242 = pnand %p240, %p241
      %p243 = pneg %p242
      // Predicated region
      $region33: #{tpu_custom_call.1} parent=5 // pred_check
        _
      $region34: #{tpu_custom_call.1} parent=5 // pred_check_branch
        %245 = sbr.rel (%p242) target = $region36
      $region35: #{tpu_custom_call.1} parent=5 // pred_region
        %s246 = ssub.s32 %s13, 1
        %s247 = sand.u32 %s78, 1
        %s248 = scalar_lea.sflag [#allocation3], %s247
        %s249 = sand.u32 %s78, 1
        %s250 = smul.addr %s249, 8
        %s251 = scalar_lea.vmem [#allocation2], %s250
        // Predicated region
        $region37: #{tpu_custom_call.1} parent=35 // pred_check
          %p252 = pneg %p91
        $region38: #{tpu_custom_call.1} parent=35 // pred_check_branch
          %254 = sbr.rel (%p252) target = $region40
        $region39: #{tpu_custom_call.1} parent=35 // pred_region
          %255 = dma.done %s248, 128
        $region40: #{tpu_custom_call.1} parent=35 // pred_fallthru
          _
        %s256 = smul.u32 2, %s18
        %s257 = ssub.s32 5, %s256
        %p258 = scmp.lt.s32.totalorder %s257, 2
        %s259 = scalar_select %p258, %s257, 2
        %s260 = smul.u32 64, %s259
        %p261 = scmp.lt.s32.totalorder %s256, 4
        %s262 = scalar_select %p261, %s256, 4
        %s263 = smul.addr %s262, 4
        %s264 = scalar_lea.vmem %s0, %s263
        %p265 = pneg %p39
        %p266 = pneg %p36
        %s267 = smul.u32 2, %s18
        %s268 = ssub.s32 5, %s267
        %p269 = scmp.lt.s32.totalorder %s268, 2
        %s270 = scalar_select %p269, %s268, 2
        %s271 = smul.u32 64, %s270
        %p272 = scmp.lt.s32.totalorder %s267, 4
        %s273 = scalar_select %p272, %s267, 4
        %s274 = smul.addr %s273, 4
        %s275 = scalar_lea.vmem %s1, %s274
        %p276 = pneg %p65
        %p277 = pneg %p62
        %s278 = sand.u32 %s78, 1
        %s279 = scalar_lea.sflag [#allocation3], %s278
        %s280 = sand.u32 %s78, 1
        %s281 = smul.addr %s280, 8
        %s282 = scalar_lea.vmem [#allocation2], %s281
        %p283 = pneg %p91
        %p284 = pneg %p88
        %s285 = smul.u32 2, %s18
        %s286 = ssub.s32 5, %s285
        %p287 = scmp.lt.s32.totalorder %s286, 2
        %s288 = scalar_select %p287, %s286, 2
        %s289 = smul.u32 128, %s288
        %p290 = scmp.lt.s32.totalorder %s285, 4
        %s291 = scalar_select %p290, %s285, 4
        %s292 = smul.addr %s291, 8
        %s293 = scalar_lea.vmem %s3, %s292
        %p294 = pneg %p117
        %p295 = pneg %p114
        %p296 = pneg %p143
        %p297 = pneg %p140
        %s298 = sand.u32 %s130, 1
        %s299 = sand.u32 %s130, 1
        %s300 = smul.addr %s299, 16
        %s301 = scalar_lea.vmem [#allocation4], %s300
        %s302 = smul.u32 2, %s18
        %s303 = ssub.s32 5, %s302
        %p304 = scmp.lt.s32.totalorder %s303, 2
        %s305 = scalar_select %p304, %s303, 2
        %s306 = smul.u32 64, %s305
        %p307 = scmp.lt.s32.totalorder %s302, 4
        %s308 = scalar_select %p307, %s302, 4
        %s309 = smul.addr %s308, 4
        %s310 = scalar_lea.vmem %s0, %s309
        %s311 = smul.u32 2, %s18
        %s312 = ssub.s32 5, %s311
        %p313 = scmp.lt.s32.totalorder %s312, 2
        %s314 = scalar_select %p313, %s312, 2
        %s315 = smul.u32 64, %s314
        %s316 = smul.u32 2, %s18
        %s317 = ssub.s32 5, %s316
        %p318 = scmp.lt.s32.totalorder %s317, 2
        %s319 = scalar_select %p318, %s317, 2
        %s320 = smul.u32 64, %s319
        %p321 = scmp.lt.s32.totalorder %s316, 4
        %s322 = scalar_select %p321, %s316, 4
        %s323 = smul.addr %s322, 4
        %s324 = scalar_lea.vmem %s1, %s323
        %s325 = smul.u32 2, %s18
        %s326 = ssub.s32 5, %s325
        %p327 = scmp.lt.s32.totalorder %s326, 2
        %s328 = scalar_select %p327, %s326, 2
        %s329 = smul.u32 64, %s328
        %s330 = smul.u32 2, %s18
        %s331 = ssub.s32 5, %s330
        %p332 = scmp.lt.s32.totalorder %s331, 2
        %s333 = scalar_select %p332, %s331, 2
        %s334 = smul.u32 64, %s333
        %s335 = smul.u32 2, %s18
        %s336 = ssub.s32 5, %s335
        %p337 = scmp.lt.s32.totalorder %s336, 2
        %s338 = scalar_select %p337, %s336, 2
        %s339 = smul.u32 128, %s338
        %p340 = scmp.lt.s32.totalorder %s335, 4
        %s341 = scalar_select %p340, %s335, 4
        %s342 = smul.addr %s341, 8
        %s343 = scalar_lea.vmem %s3, %s342
        %s344 = smul.u32 2, %s18
        %s345 = ssub.s32 5, %s344
        %p346 = scmp.lt.s32.totalorder %s345, 2
        %s347 = scalar_select %p346, %s345, 2
        %s348 = smul.u32 128, %s347
        %s349 = smul.u32 2, %s18
        %s350 = ssub.s32 5, %s349
        %p351 = scmp.lt.s32.totalorder %s350, 2
        %s352 = scalar_select %p351, %s350, 2
        %s353 = smul.u32 128, %s352
        %v354 = vld [vmem:[%s310] sm:$0xf]
        %v355 = vld [vmem:[%s310 + $0x4] sm:$0xf]
        %v356 = vunpack.c.l.bf16 %v354
        %v357 = vunpack.c.l.bf16 %v355
        %v358 = vmul.f32 %v356, %v356
        %v359 = vmul.f32 %v357, %v357
        %360 = vadd.xlane.f32.xlu0 %v358
        %v361 = vpop.xlane.xlu0 %360
        %362 = vadd.xlane.f32.xlu0 %v359
        %v363 = vpop.xlane.xlu0 %362
        %v364 = vld [vmem:[%s324] sm:$0xf]
        %v365 = vld [vmem:[%s324 + $0x4] sm:$0xf]
        %v366 = vunpack.c.l.bf16 %v364
        %v367 = vunpack.c.l.bf16 %v365
        %v368 = vmul.f32 %v366, %v366
        %v369 = vmul.f32 %v367, %v367
        %370 = vadd.xlane.f32.xlu0 %v368
        %v371 = vpop.xlane.xlu0 %370
        %372 = vadd.xlane.f32.xlu0 %v369
        %v373 = vpop.xlane.xlu0 %372
        %v374 = vmul.f32 %v356, %v366
        %v375 = vmul.f32 %v357, %v367
        %376 = vadd.xlane.f32.xlu0 %v374
        %v377 = vpop.xlane.xlu0 %376
        %378 = vadd.xlane.f32.xlu0 %v375
        %v379 = vpop.xlane.xlu0 %378
        %v380 = vld [vmem:[%s251] sm:$0xf]
        %v381 = vld [vmem:[%s251 + $0x4] sm:$0xf]
        %v382 = vunpack.c.l.bf16 %v380
        %v383 = vunpack.c.l.bf16 %v381
        %v384 = vmul.f32 %v382, %v382
        %v385 = vmul.f32 %v383, %v383
        %386 = vadd.xlane.f32.xlu0 %v384
        %v387 = vpop.xlane.xlu0 %386
        %388 = vadd.xlane.f32.xlu0 %v385
        %v389 = vpop.xlane.xlu0 %388
        %v390 = vmul.f32 %v356, %v382
        %v391 = vmul.f32 %v357, %v383
        %392 = vadd.xlane.f32.xlu0 %v390
        %v393 = vpop.xlane.xlu0 %392
        %394 = vadd.xlane.f32.xlu0 %v391
        %v395 = vpop.xlane.xlu0 %394
        %v396 = vmax.f32 %v361, 1e-24
        %v397 = vmax.f32 %v363, 1e-24
        %v398 = vrsqrt.pop %v396
        %v399 = vrsqrt.pop %v397
        %v400 = vmax.f32 %v371, 1e-24
        %v401 = vmax.f32 %v373, 1e-24
        %v402 = vrsqrt.pop %v400
        %v403 = vrsqrt.pop %v401
        %v404 = vmax.f32 %v387, 1e-24
        %v405 = vmax.f32 %v389, 1e-24
        %v406 = vrsqrt.pop %v404
        %v407 = vrsqrt.pop %v405
        %v408 = vmul.f32 %v377, %v398
        %v409 = vmul.f32 %v379, %v399
        %v410 = vmul.f32 %v408, %v402
        %v411 = vmul.f32 %v409, %v403
        %v412 = vmul.f32 %v410, 20.0
        %v413 = vmul.f32 %v411, 20.0
        %v414 = vmul.f32 %v393, %v398
        %v415 = vmul.f32 %v395, %v399
        %v416 = vmul.f32 %v414, %v406
        %v417 = vmul.f32 %v415, %v407
        %v418 = vmul.f32 %v416, 20.0
        %v419 = vmul.f32 %v417, 20.0
        %v420 = vld [vmem:[%s343] sm:$0xff]
        %v421 = vld [vmem:[%s343 + $0x8] sm:$0xff]
        %v422 = vsub.f32 %v418, %v412
        %v423 = vsub.f32 %v419, %v413
        %v424 = vmul.f32 %v420, %v422
        %v425 = vmul.f32 %v421, %v423
        %v426 = vmax.f32 %v424, 0.0
        %v427 = vmax.f32 %v425, 0.0
        %v428 = vand.u32 2147483647, %v424
        %v429 = vand.u32 2147483647, %v425
        %v430 = vsub.f32 0.0, %v428
        %v431 = vsub.f32 0.0, %v429
        %v432 = vmul.f32 %v430, 1.442695
        %v433 = vpow.pop %v432
        %v434 = vmul.f32 %v431, 1.442695
        %v435 = vpow.pop %v434
        %v436 = vadd.f32 %v433, 1.0
        %v437 = vadd.f32 %v435, 1.0
        %v438 = vlog2.pop %v436
        %v439 = vmul.f32 %v438, 0.6931472
        %v440 = vlog2.pop %v437
        %v441 = vmul.f32 %v440, 0.6931472
        %v442 = vadd.f32 %v426, %v439
        %v443 = vadd.f32 %v427, %v441
        %v444 = vlaneseq
        %v445 = vshrl.u32 %v444, 7
        %v446 = vadd.s32 %v445, 8
        %s447 = smul.u32 %s18, 16
        %v448 = vstv %s447
        %v449 = vadd.s32 %v445, %v448
        %v450 = vadd.s32 %v446, %v448
        %vm451 = vcmp.lt.s32.totalorder %v449, 40
        %vm452 = vcmp.lt.s32.totalorder %v450, 40
        %v453 = vsel %vm451, %v442, 0.0
        %v454 = vsel %vm452, %v443, 0.0
        %vm455 = vcmask 7168
        %456 = vst.msk [vmem:[%s301] sm:$0xff] %vm455, %v453
        %457 = vst.msk [vmem:[%s301 + $0x8] sm:$0xff] %vm455, %v454
        %s458 = sand.u32 %s130, 1
        %s459 = sand.u32 %s130, 1
        %s460 = smul.addr %s459, 16
        %s461 = scalar_lea.vmem [#allocation4], %s460
        // Predicated region
        $region41: #{tpu_custom_call.1} parent=35 // pred_check
          %p462 = pneg %p140
        $region42: #{tpu_custom_call.1} parent=35 // pred_check_branch
          %464 = sbr.rel (%p462) target = $region44
        $region43: #{tpu_custom_call.1} parent=35 // pred_region
          %s465 = smul.u32 2, %s18
          %s466 = ssub.s32 5, %s465
          %p467 = scmp.lt.s32.totalorder %s466, 2
          %s468 = scalar_select %p467, %s466, 2
          %s469 = smul.u32 128, %s468
          %p470 = scmp.ne.s32.totalorder 0, %s469
          %s471 = smul.addr %s465, 8
          %s472 = scalar_lea.vmem %s4, %s471
          // Predicated region
          $region45: #{tpu_custom_call.1} parent=43 // pred_check
            %p473 = pneg %p470
          $region46: #{tpu_custom_call.1} parent=43 // pred_check_branch
            %475 = sbr.rel (%p473) target = $region48
          $region47: #{tpu_custom_call.1} parent=43 // pred_region
            // Predicated region
            $region49: #{tpu_custom_call.1} parent=47 // pred_check
              _
            $region50: #{tpu_custom_call.1} parent=47 // pred_check_branch
              %477 = sbr.rel (0) target = $region52
            $region51: #{tpu_custom_call.1} parent=47 // pred_region
              // Predicated region
              $region71: #{tpu_custom_call.1} parent=51 // pred_check
                _
              $region72: #{tpu_custom_call.1} parent=51 // pred_check_branch
                %528 = sbr.rel (0) target = $region74
              $region73: #{tpu_custom_call.1} parent=51 // pred_region
                %s529 = sshrl.u32 %s468, 1
                // While loop
                $region75: #{tpu_custom_call.1} parent=73 // loop_pre_header
                  _
                $region76: #{tpu_custom_call.1} parent=73 // loop_header
                  %s531 = sphi 0, %s533
                  %p532 = scmp.ge.s32.totalorder %s531, %s529
                  %s536 = sphi 0, %s545
                  %s537 = sphi %s461, %s548
                  %s538 = sphi %s472, %s549
                $region77: #{tpu_custom_call.1} parent=73 // loop_header_branch
                  %535 = sbr.rel (%p532) target = $region81
                $region78: #{tpu_custom_call.1} parent=73 // loop_body
                  %v539 = vld [vmem:[%s537] sm:$0xff]
                  %540 = vst [vmem:[%s538] sm:$0xff] %v539
                  %v541 = vld [vmem:[%s537 + $0x8] sm:$0xff]
                  %542 = vst [vmem:[%s538 + $0x8] sm:$0xff] %v541
                  %s543 = sadd.s32 1, %s536
                  %p544 = scmp.ge.s32.totalorder %s543, %s529
                  %s545 = scalar_select %p544, 0, %s543
                  %s546 = smul.u32 %s545, 16
                  %s547 = smul.u32 %s545, 16
                  %s548 = scalar_lea.vmem %s461, %s546 [#allocation4]
                  %s549 = scalar_lea.vmem %s472, %s547
                $region79: #{tpu_custom_call.1} parent=73 // loop_footer
                  %s533 = sadd.s32 %s531, 1
                $region80: #{tpu_custom_call.1} parent=73 // loop_footer_branch
                  %530 = sbr.rel target = $region76
                $region81: #{tpu_custom_call.1} parent=73 // loop_exit
                  _
                %s550 = sshrl.u32 %s468, 1
                %s551 = sand.u32 %s468, 1
                %s552 = smul.u32 %s550, 2
                %s553 = smul.u32 8, %s552
                %s554 = scalar_lea.vmem %s461, %s553 [#allocation4]
                %s555 = smul.u32 8, %s552
                %s556 = scalar_lea.vmem %s472, %s555
                // While loop
                $region82: #{tpu_custom_call.1} parent=73 // loop_pre_header
                  _
                $region83: #{tpu_custom_call.1} parent=73 // loop_header
                  %s558 = sphi 0, %s560
                  %p559 = scmp.ge.s32.totalorder %s558, %s551
                  %s563 = sphi 0, %s570
                  %s564 = sphi %s554, %s573
                  %s565 = sphi %s556, %s574
                $region84: #{tpu_custom_call.1} parent=73 // loop_header_branch
                  %562 = sbr.rel (%p559) target = $region88
                $region85: #{tpu_custom_call.1} parent=73 // loop_body
                  %v566 = vld [vmem:[%s564] sm:$0xff]
                  %567 = vst [vmem:[%s565] sm:$0xff] %v566
                  %s568 = sadd.s32 1, %s563
                  %p569 = scmp.ge.s32.totalorder %s568, %s551
                  %s570 = scalar_select %p569, 0, %s568
                  %s571 = smul.u32 %s570, 8
                  %s572 = smul.u32 %s570, 8
                  %s573 = scalar_lea.vmem %s554, %s571 [#allocation4]
                  %s574 = scalar_lea.vmem %s556, %s572
                $region86: #{tpu_custom_call.1} parent=73 // loop_footer
                  %s560 = sadd.s32 %s558, 1
                $region87: #{tpu_custom_call.1} parent=73 // loop_footer_branch
                  %557 = sbr.rel target = $region83
                $region88: #{tpu_custom_call.1} parent=73 // loop_exit
                  _
              $region74: #{tpu_custom_call.1} parent=51 // pred_fallthru
                _
              // Predicated region
              $region89: #{tpu_custom_call.1} parent=51 // pred_check
                _
              $region90: #{tpu_custom_call.1} parent=51 // pred_check_branch
                %576 = sbr.rel target = $region92
              $region91: #{tpu_custom_call.1} parent=51 // pred_region
                _
              $region92: #{tpu_custom_call.1} parent=51 // pred_fallthru
                _
            $region52: #{tpu_custom_call.1} parent=47 // pred_fallthru
              _
            // Predicated region
            $region53: #{tpu_custom_call.1} parent=47 // pred_check
              _
            $region54: #{tpu_custom_call.1} parent=47 // pred_check_branch
              %479 = sbr.rel target = $region56
            $region55: #{tpu_custom_call.1} parent=47 // pred_region
              %s481 = sshrl.u32 %s468, 1
              // While loop
              $region57: #{tpu_custom_call.1} parent=55 // loop_pre_header
                _
              $region58: #{tpu_custom_call.1} parent=55 // loop_header
                %s483 = sphi 0, %s485
                %p484 = scmp.ge.s32.totalorder %s483, %s481
                %s488 = sphi 0, %s497
                %s489 = sphi %s461, %s500
                %s490 = sphi %s472, %s501
              $region59: #{tpu_custom_call.1} parent=55 // loop_header_branch
                %487 = sbr.rel (%p484) target = $region63
              $region60: #{tpu_custom_call.1} parent=55 // loop_body
                %v491 = vld [vmem:[%s489] sm:$0xff]
                %492 = vst [vmem:[%s490] sm:$0xff] %v491
                %v493 = vld [vmem:[%s489 + $0x8] sm:$0xff]
                %494 = vst [vmem:[%s490 + $0x8] sm:$0xff] %v493
                %s495 = sadd.s32 1, %s488
                %p496 = scmp.ge.s32.totalorder %s495, %s481
                %s497 = scalar_select %p496, 0, %s495
                %s498 = smul.u32 %s497, 16
                %s499 = smul.u32 %s497, 16
                %s500 = scalar_lea.vmem %s461, %s498 [#allocation4]
                %s501 = scalar_lea.vmem %s472, %s499
              $region61: #{tpu_custom_call.1} parent=55 // loop_footer
                %s485 = sadd.s32 %s483, 1
              $region62: #{tpu_custom_call.1} parent=55 // loop_footer_branch
                %482 = sbr.rel target = $region58
              $region63: #{tpu_custom_call.1} parent=55 // loop_exit
                _
              %s502 = sshrl.u32 %s468, 1
              %s503 = sand.u32 %s468, 1
              %s504 = smul.u32 %s502, 2
              %s505 = smul.u32 8, %s504
              %s506 = scalar_lea.vmem %s461, %s505 [#allocation4]
              %s507 = smul.u32 8, %s504
              %s508 = scalar_lea.vmem %s472, %s507
              // While loop
              $region64: #{tpu_custom_call.1} parent=55 // loop_pre_header
                _
              $region65: #{tpu_custom_call.1} parent=55 // loop_header
                %s510 = sphi 0, %s512
                %p511 = scmp.ge.s32.totalorder %s510, %s503
                %s515 = sphi 0, %s522
                %s516 = sphi %s506, %s525
                %s517 = sphi %s508, %s526
              $region66: #{tpu_custom_call.1} parent=55 // loop_header_branch
                %514 = sbr.rel (%p511) target = $region70
              $region67: #{tpu_custom_call.1} parent=55 // loop_body
                %v518 = vld [vmem:[%s516] sm:$0xff]
                %519 = vst [vmem:[%s517] sm:$0xff] %v518
                %s520 = sadd.s32 1, %s515
                %p521 = scmp.ge.s32.totalorder %s520, %s503
                %s522 = scalar_select %p521, 0, %s520
                %s523 = smul.u32 %s522, 8
                %s524 = smul.u32 %s522, 8
                %s525 = scalar_lea.vmem %s506, %s523 [#allocation4]
                %s526 = scalar_lea.vmem %s508, %s524
              $region68: #{tpu_custom_call.1} parent=55 // loop_footer
                %s512 = sadd.s32 %s510, 1
              $region69: #{tpu_custom_call.1} parent=55 // loop_footer_branch
                %509 = sbr.rel target = $region65
              $region70: #{tpu_custom_call.1} parent=55 // loop_exit
                _
            $region56: #{tpu_custom_call.1} parent=47 // pred_fallthru
              _
          $region48: #{tpu_custom_call.1} parent=43 // pred_fallthru
            _
          %577 = vnop
        $region44: #{tpu_custom_call.1} parent=35 // pred_fallthru
          _
      $region36: #{tpu_custom_call.1} parent=5 // pred_fallthru
        _
      %p578 = scmp.le.s32.totalorder 2, %s13
      // Predicated region
      $region93: #{tpu_custom_call.1} parent=5 // pred_check
        %p579 = pneg %p578
      $region94: #{tpu_custom_call.1} parent=5 // pred_check_branch
        %581 = sbr.rel (%p579) target = $region96
      $region95: #{tpu_custom_call.1} parent=5 // pred_region
        %s582 = ssub.s32 %s13, 2
        // Predicated region
        $region97: #{tpu_custom_call.1} parent=95 // pred_check
          %p583 = pneg %p146
        $region98: #{tpu_custom_call.1} parent=95 // pred_check_branch
          %585 = sbr.rel (%p583) target = $region100
        $region99: #{tpu_custom_call.1} parent=95 // pred_region
          %s586 = sand.u32 %s131, 1
          %s587 = sand.u32 %s131, 1
          %s588 = smul.addr %s587, 16
          %s589 = scalar_lea.vmem [#allocation4], %s588
        $region100: #{tpu_custom_call.1} parent=95 // pred_fallthru
          _
      $region96: #{tpu_custom_call.1} parent=5 // pred_fallthru
        _
    $region6: #{tpu_custom_call.1} parent=1 // loop_footer
      %s17 = sadd.s32 1, %s13
    $region7: #{tpu_custom_call.1} parent=1 // loop_footer_branch
      %12 = sbr.rel target = $region3
    $region8: #{tpu_custom_call.1} parent=1 // loop_exit
      _
    %590 = vsyncpa [#allocation3], 1
    %s591 = scalar_lea.sflag [#allocation3], 1
    %592 = vsyncpa %s591, 1

</llo_original>
